<compile_context>
chip_gen: v6e
topology: v6e:2x2x1
jax: 0.10.0
libtpu: 0.0.40
codegen_flags: <defaults>
</compile_context>

<pallas_src>
import jax
import jax.numpy as jnp
from jax.experimental import pallas as pl
from jax.experimental.pallas import tpu as pltpu


def _noisefusion_kernel(q_ref, kv_ref, o_ref, acc_ref):
    # q_ref  : (1, 1, q_tile, E)   Q tile for feature i, batch b, q-tile t
    # kv_ref : (1, Lk, E)          K = V = noise_feature block for batch b
    # o_ref  : (1, q_tile, E)      fused output (mean over k)
    # acc_ref: (1, q_tile, E) f32  running sum over the k features
    i = pl.program_id(2)            # index over the k image features (reduction)
    nk = pl.num_programs(2)

    @pl.when(i == 0)
    def _():
        acc_ref[...] = jnp.zeros_like(acc_ref)

    q = q_ref[0, 0]                 # (q_tile, E)
    kv = kv_ref[0]                  # (Lk, E)

    scale = 1.0 / jnp.sqrt(jnp.float32(q.shape[-1]))
    # scores: contract E-vs-E -> (q_tile, Lk), f32 accumulation on the MXU.
    scores = jax.lax.dot_general(
        q, kv, (((1,), (1,)), ((), ())),
        preferred_element_type=jnp.float32) * scale
    # TODO(synk): attn_mask / masked_fill path is unused by Noisefusion.forward
    # (it never passes a mask), so it is intentionally not implemented here.
    m = jnp.max(scores, axis=-1, keepdims=True)
    p = jnp.exp(scores - m)
    attn = p / jnp.sum(p, axis=-1, keepdims=True)

    ctx = jnp.dot(attn.astype(kv.dtype), kv,
                  preferred_element_type=jnp.float32)      # (q_tile, E)
    acc_ref[0] = acc_ref[0] + ctx

    @pl.when(i == nk - 1)
    def _():
        o_ref[0] = (acc_ref[0] * (1.0 / nk)).astype(o_ref.dtype)


def noisefusion(image_features, noise_feature, q_tile=512):
    """image_features: list of k arrays (B, Lq, E); noise_feature: (B, Lk, E)."""
    q = jnp.stack(image_features, axis=0)                   # (k, B, Lq, E)
    k_feat, B, Lq, E = q.shape
    _, Lk, _ = noise_feature.shape

    # Pick a q tile: big enough to amortize grid-step overhead, but never pad —
    # fall back to the full Lq if it doesn't divide evenly (or Lq is small).
    q_tile = min(q_tile, Lq)
    if Lq % q_tile != 0 or q_tile % 8 != 0:
        q_tile = Lq
    # TODO(synk): very long Lk would want a flash-style online-softmax tiling
    # over the key axis; here the full (Lk, E) noise block is kept resident.

    dsize = jnp.dtype(q.dtype).itemsize
    cost = pl.CostEstimate(
        flops=4 * k_feat * B * Lq * Lk * E,
        transcendentals=k_feat * B * Lq * Lk,
        bytes_accessed=(q.size + k_feat * noise_feature.size + B * Lq * E) * dsize,
    )

    return pl.pallas_call(
        _noisefusion_kernel,
        out_shape=jax.ShapeDtypeStruct((B, Lq, E), noise_feature.dtype),
        grid_spec=pltpu.PrefetchScalarGridSpec(
            num_scalar_prefetch=0,
            grid=(B, Lq // q_tile, k_feat),                  # k (mean) axis last
            in_specs=[
                pl.BlockSpec((1, 1, q_tile, E), lambda b, t, i: (i, b, t, 0)),
                pl.BlockSpec((1, Lk, E), lambda b, t, i: (b, 0, 0)),
            ],
            out_specs=pl.BlockSpec((1, q_tile, E), lambda b, t, i: (b, t, 0)),
            scratch_shapes=[pltpu.VMEM((1, q_tile, E), jnp.float32)],
        ),
        compiler_params=pltpu.CompilerParams(
            dimension_semantics=("parallel", "parallel", "arbitrary")),
        cost_estimate=cost,
    )(q, noise_feature)


def _reference(image_features, noise_feature):
    """Plain-JAX mirror of Noisefusion.forward."""
    E = noise_feature.shape[-1]
    outs = []
    for qf in image_features:
        scores = jnp.einsum("bqe,bke->bqk", qf, noise_feature) / jnp.sqrt(
            jnp.float32(E))
        attn = jax.nn.softmax(scores, axis=-1)
        outs.append(jnp.einsum("bqk,bke->bqe", attn, noise_feature))
    return jnp.mean(jnp.stack(outs, axis=0), axis=0)


if __name__ == "__main__":
    key = jax.random.PRNGKey(0)
    B, L, E, K = 2, 8, 32, 4          # batch, seq, hidden, number of features

    keys = jax.random.split(key, K + 1)
    noise_feature = jax.random.normal(keys[0], (B, L, E), dtype=jnp.float32)
    image_features = [
        jax.random.normal(keys[i + 1], (B, L, E), dtype=jnp.float32)
        for i in range(K)
    ]

    fwd = jax.jit(lambda nf, *ifs: noisefusion(list(ifs), nf))
    out = jax.block_until_ready(fwd(noise_feature, *image_features))

    ref = _reference(image_features, noise_feature)

    assert out.shape == ref.shape == (B, L, E), out.shape
    assert bool(jnp.allclose(out, ref, atol=1e-4, rtol=1e-4)), \
        float(jnp.abs(out - ref).max())
    print("KERNEL_OK")
</pallas_src>

<mosaic_0001>
module attributes {stable_mosaic.version = 11 : i64} {
  func.func @_noisefusion_kernel(%arg0: i32, %arg1: i32, %arg2: i32, %arg3: memref<1x1x8x32xf32, #tpu.memory_space<vmem>>, %arg4: memref<1x8x32xf32, #tpu.memory_space<vmem>>, %arg5: memref<1x8x32xf32, #tpu.memory_space<vmem>>, %arg6: memref<1x8x32xf32, #tpu.memory_space<vmem>>) attributes {dimension_semantics = [#tpu.dimension_semantics<parallel>, #tpu.dimension_semantics<parallel>, #tpu.dimension_semantics<arbitrary>], iteration_bounds = array<i64: 2, 1, 4>, scalar_prefetch = 0 : i64, scratch_operands = 1 : i64, tpu.core_type = #tpu.core_type<tc>, window_params = [{transform_indices = @transform_0, window_bounds = array<i64: 1, 1, 8, 32>}, {transform_indices = @transform_1, window_bounds = array<i64: 1, 8, 32>}, {transform_indices = @transform_2, window_bounds = array<i64: 1, 8, 32>}]} {
    %c0_i32 = arith.constant 0 : i32
    %0 = arith.cmpi eq, %arg2, %c0_i32 : i32
    %1 = arith.extui %0 : i1 to i32
    %c0_i32_0 = arith.constant 0 : i32
    %2 = arith.cmpi ne, %1, %c0_i32_0 : i32
    scf.if %2 {
      %cst_19 = arith.constant 0.000000e+00 : f32
      %31 = vector.broadcast %cst_19 : f32 to vector<1x8x32xf32>
      %c0_20 = arith.constant 0 : index
      %c0_21 = arith.constant 0 : index
      %c0_22 = arith.constant 0 : index
      %32 = vector.load %arg6[%c0_20, %c0_21, %c0_22] : memref<1x8x32xf32, #tpu.memory_space<vmem>>, vector<1x8x32xf32>
      tpu.vector_store %arg6[%c0_20, %c0_21, %c0_22], %31 {strides = array<i32>} : memref<1x8x32xf32, #tpu.memory_space<vmem>>, vector<1x8x32xf32>,
    } else {
    }
    %c0 = arith.constant 0 : index
    %c0_1 = arith.constant 0 : index
    %c0_2 = arith.constant 0 : index
    %c0_3 = arith.constant 0 : index
    %3 = vector.load %arg3[%c0, %c0_1, %c0_2, %c0_3] : memref<1x1x8x32xf32, #tpu.memory_space<vmem>>, vector<1x1x8x32xf32>
    %4 = vector.shape_cast %3 : vector<1x1x8x32xf32> to vector<8x32xf32>
    %c0_4 = arith.constant 0 : index
    %c0_5 = arith.constant 0 : index
    %c0_6 = arith.constant 0 : index
    %5 = vector.load %arg4[%c0_4, %c0_5, %c0_6] : memref<1x8x32xf32, #tpu.memory_space<vmem>>, vector<1x8x32xf32>
    %6 = vector.shape_cast %5 : vector<1x8x32xf32> to vector<8x32xf32>
    %cst = arith.constant 3.200000e+01 : f32
    %7 = math.sqrt %cst : f32
    %cst_7 = arith.constant 1.000000e+00 : f32
    %8 = arith.divf %cst_7, %7 : f32
    %cst_8 = arith.constant dense<0.000000e+00> : vector<8x8xf32>
    %9 = tpu.matmul %4, %6, %cst_8 {dimension_numbers = #tpu.dot_dimension_numbers<[1], [1], [0], [0], [0, 0, 1, 0], [], []>} : vector<8x32xf32>, vector<8x32xf32>, vector<8x8xf32> -> vector<8x8xf32>
    %10 = vector.broadcast %8 : f32 to vector<8x8xf32>
    %11 = arith.mulf %9, %10 : vector<8x8xf32>
    %cst_9 = arith.constant dense<0xFF800000> : vector<8xf32>
    %12 = vector.multi_reduction <maximumf>, %11, %cst_9 [1] : vector<8x8xf32> to vector<8xf32>
    %13 = vector.shape_cast %12 : vector<8xf32> to vector<8x1xf32>
    %14 = vector.broadcast %13 : vector<8x1xf32> to vector<8x8xf32>
    %15 = arith.subf %11, %14 : vector<8x8xf32>
    %16 = math.exp %15 : vector<8x8xf32>
    %cst_10 = arith.constant dense<0.000000e+00> : vector<8xf32>
    %17 = vector.multi_reduction <add>, %16, %cst_10 [1] : vector<8x8xf32> to vector<8xf32>
    %18 = vector.shape_cast %17 : vector<8xf32> to vector<8x1xf32>
    %19 = vector.broadcast %18 : vector<8x1xf32> to vector<8x8xf32>
    %20 = arith.divf %16, %19 : vector<8x8xf32>
    %cst_11 = arith.constant dense<0.000000e+00> : vector<8x32xf32>
    %21 = tpu.matmul %20, %6, %cst_11 {dimension_numbers = #tpu.dot_dimension_numbers<[1], [0], [0], [1], [0, 0, 1, 1], [], []>} : vector<8x8xf32>, vector<8x32xf32>, vector<8x32xf32> -> vector<8x32xf32>
    %c0_12 = arith.constant 0 : index
    %c0_13 = arith.constant 0 : index
    %c0_14 = arith.constant 0 : index
    %22 = vector.load %arg6[%c0_12, %c0_13, %c0_14] : memref<1x8x32xf32, #tpu.memory_space<vmem>>, vector<1x8x32xf32>
    %23 = vector.shape_cast %22 : vector<1x8x32xf32> to vector<8x32xf32>
    %24 = arith.addf %23, %21 : vector<8x32xf32>
    %c0_15 = arith.constant 0 : index
    %c0_16 = arith.constant 0 : index
    %c0_17 = arith.constant 0 : index
    %25 = vector.load %arg6[%c0_15, %c0_16, %c0_17] : memref<1x8x32xf32, #tpu.memory_space<vmem>>, vector<1x8x32xf32>
    %26 = vector.shape_cast %25 : vector<1x8x32xf32> to vector<8x32xf32>
    %27 = vector.shape_cast %24 : vector<8x32xf32> to vector<1x8x32xf32>
    tpu.vector_store %arg6[%c0_15, %c0_16, %c0_17], %27 {strides = array<i32>} : memref<1x8x32xf32, #tpu.memory_space<vmem>>, vector<1x8x32xf32>,
    %c3_i32 = arith.constant 3 : i32
    %28 = arith.cmpi eq, %arg2, %c3_i32 : i32
    %29 = arith.extui %28 : i1 to i32
    %c0_i32_18 = arith.constant 0 : i32
    %30 = arith.cmpi ne, %29, %c0_i32_18 : i32
    scf.if %30 {
      %c0_19 = arith.constant 0 : index
      %c0_20 = arith.constant 0 : index
      %c0_21 = arith.constant 0 : index
      %31 = vector.load %arg6[%c0_19, %c0_20, %c0_21] : memref<1x8x32xf32, #tpu.memory_space<vmem>>, vector<1x8x32xf32>
      %32 = vector.shape_cast %31 : vector<1x8x32xf32> to vector<8x32xf32>
      %cst_22 = arith.constant 2.500000e-01 : f32
      %33 = vector.broadcast %cst_22 : f32 to vector<8x32xf32>
      %34 = arith.mulf %32, %33 : vector<8x32xf32>
      %c0_23 = arith.constant 0 : index
      %c0_24 = arith.constant 0 : index
      %c0_25 = arith.constant 0 : index
      %35 = vector.load %arg5[%c0_23, %c0_24, %c0_25] : memref<1x8x32xf32, #tpu.memory_space<vmem>>, vector<1x8x32xf32>
      %36 = vector.shape_cast %35 : vector<1x8x32xf32> to vector<8x32xf32>
      %37 = vector.shape_cast %34 : vector<8x32xf32> to vector<1x8x32xf32>
      tpu.vector_store %arg5[%c0_23, %c0_24, %c0_25], %37 {strides = array<i32>} : memref<1x8x32xf32, #tpu.memory_space<vmem>>, vector<1x8x32xf32>,
    } else {
    }
    return
  }
  func.func @transform_0(%arg0: i32, %arg1: i32, %arg2: i32) -> (i32, i32, i32, i32) {
    %c0_i32 = arith.constant 0 : i32
    %c0_i32_0 = arith.constant 0 : i32
    return %arg2, %arg0, %arg1, %c0_i32 : i32, i32, i32, i32
  }
  func.func @transform_1(%arg0: i32, %arg1: i32, %arg2: i32) -> (i32, i32, i32) {
    %c0_i32 = arith.constant 0 : i32
    %c0_i32_0 = arith.constant 0 : i32
    %c0_i32_1 = arith.constant 0 : i32
    return %arg0, %c0_i32, %c0_i32_0 : i32, i32, i32
  }
  func.func @transform_2(%arg0: i32, %arg1: i32, %arg2: i32) -> (i32, i32, i32) {
    %c0_i32 = arith.constant 0 : i32
    %c0_i32_0 = arith.constant 0 : i32
    return %arg0, %arg1, %c0_i32 : i32, i32, i32
  }
}

</mosaic_0001>

<llo_original>
// kernel: _lambda_.1
$region0: #{_lambda_.1}
  #allocation0 [shape = 'u32[]', space=smem, size = 0x4, offset = 0x4, fixed_abs, tag = 'smem constant byte address 0x4 - core index']
  #allocation1 [shape = 'u32[144,128]{1,0:T(1,128)}', space=vmem, size = 0x12000, scoped, tag = 'internal scratch']
  #allocation2 [shape = 'f32[1,8,32]{2,1,0:T(8,128)}', space=vmem, size = 0x1000, scoped, tag = 'scratch operand']
  %s0 = inlined_call_operand.vmem [shape: f32[4,2,8,32], index: 0, kind: input, shape index: {}]
  %s1 = inlined_call_operand.vmem [shape: f32[2,8,32], index: 1, kind: input, shape index: {}]
  %s2 = inlined_call_operand.hbm [shape: f32[2,8,32], index: 2, kind: output, shape index: {}]
  %s3 = sld [smem:[#allocation0]]
  $region49: #{_lambda_.1} parent=0
    _
  %s5 = ssub.s32 1, %s3
  %s6 = scalar_select 0, %s5, %s3
  $region1: #{_lambda_.1} parent=0
    #allocation3 [shape = 'u8[8192]{0}', space=vmem, size = 0x2000, scoped, tag = 'output window, operand 0']
    #allocation4 [shape = 's32[2]{0}', space=sflag, size = 0x8, scoped, tag = 'scoped memory for _lambda_.1']
    %7 = vsyncpa [#allocation4], 0
    %s8 = scalar_lea.sflag [#allocation4], 1
    %9 = vsyncpa %s8, 0
    loop: start=0, step=1, limit=10
    $region2: #{_lambda_.1} parent=1 // loop_pre_header
      _
    $region3: #{_lambda_.1} parent=1 // loop_header
      %s11 = sphi 0, %s15
      %p12 = scmp.ge.s32.totalorder %s11, 10
      %s18 = sphi 0, %s37
      %s19 = sphi 0, %s33
      %s20 = sphi 0, %s29
      %s21 = sphi 0, %s18
      %s22 = sphi 0, %s19
      %s23 = sphi 0, %s20
      %s24 = sphi 0, %s21
      %s25 = sphi 0, %s22
      %s26 = sphi 0, %s23
      %s44 = sphi 0, %s46
      %s47 = sphi 0, %s44
      %s48 = sphi 0, %s47
      %s64 = sphi 0, %s48
      %s70 = sphi 0, %s72
      %s73 = sphi 0, %s70
      %s74 = sphi 0, %s73
      %s90 = sphi 0, %s74
      %s98 = sphi 0, %s100
      %s101 = sphi 0, %s98
      %s102 = sphi 0, %s101
      %s118 = sphi 0, %s102
    $region4: #{_lambda_.1} parent=1 // loop_header_branch
      %14 = sbr.rel (%p12) target = $region8
    $region5: #{_lambda_.1} parent=1 // loop_body
      %s16 = ssub.s32 %s11, 1
      %s17 = ssub.s32 %s11, 2
      %s27 = sadd.s32 1, %s20
      %p28 = scmp.ge.s32.totalorder %s27, 4
      %s29 = scalar_select %p28, 0, %s27
      %s30 = sadd.s32 1, %s19
      %s31 = scalar_select %p28, %s30, %s19
      %p32 = scmp.ge.s32.totalorder %s31, 1
      %s33 = scalar_select %p32, 0, %s31
      %s34 = sadd.s32 1, %s18
      %s35 = scalar_select %p32, %s34, %s18
      %p36 = scmp.ge.s32.totalorder %s35, 2
      %s37 = scalar_select %p36, 0, %s35
      %s38 = ssub.s32 %s20, %s29
      %s39 = ssub.s32 %s18, %s37
      %s40 = sor.u32 %s38, %s39
      %s41 = ssub.s32 %s19, %s33
      %s42 = sor.u32 %s40, %s41
      %p43 = scmp.eq.s32.totalorder %s42, 0
      %s45 = sadd.s32 %s44, 1
      %s46 = scalar_select %p43, %s44, %s45
      %p49 = pneg %p43
      %p50 = scmp.eq.s32.totalorder %s11, 7
      %p51 = por %p49, %p50
      %p52 = scmp.ne.s32.totalorder %s44, %s47
      %p53 = scmp.eq.s32.totalorder %s11, 0
      %p54 = por %p52, %p53
      %p55 = scmp.ne.s32.totalorder %s44, %s47
      %p56 = scmp.eq.s32.totalorder %s16, 7
      %p57 = por %p55, %p56
      %p58 = scmp.ne.s32.totalorder %s47, %s48
      %p59 = scmp.eq.s32.totalorder %s16, 0
      %p60 = por %p58, %p59
      %p61 = scmp.ne.s32.totalorder %s47, %s48
      %p62 = scmp.eq.s32.totalorder %s17, 7
      %p63 = por %p61, %p62
      %p65 = scmp.ne.s32.totalorder %s48, %s64
      %p66 = scmp.eq.s32.totalorder %s17, 0
      %p67 = por %p65, %p66
      %s68 = ssub.s32 %s18, %s37
      %p69 = scmp.eq.s32.totalorder %s68, 0
      %s71 = sadd.s32 %s70, 1
      %s72 = scalar_select %p69, %s70, %s71
      %p75 = pneg %p69
      %p76 = scmp.eq.s32.totalorder %s11, 7
      %p77 = por %p75, %p76
      %p78 = scmp.ne.s32.totalorder %s70, %s73
      %p79 = scmp.eq.s32.totalorder %s11, 0
      %p80 = por %p78, %p79
      %p81 = scmp.ne.s32.totalorder %s70, %s73
      %p82 = scmp.eq.s32.totalorder %s16, 7
      %p83 = por %p81, %p82
      %p84 = scmp.ne.s32.totalorder %s73, %s74
      %p85 = scmp.eq.s32.totalorder %s16, 0
      %p86 = por %p84, %p85
      %p87 = scmp.ne.s32.totalorder %s73, %s74
      %p88 = scmp.eq.s32.totalorder %s17, 7
      %p89 = por %p87, %p88
      %p91 = scmp.ne.s32.totalorder %s74, %s90
      %p92 = scmp.eq.s32.totalorder %s17, 0
      %p93 = por %p91, %p92
      %s94 = ssub.s32 %s18, %s37
      %s95 = ssub.s32 %s19, %s33
      %s96 = sor.u32 %s94, %s95
      %p97 = scmp.eq.s32.totalorder %s96, 0
      %s99 = sadd.s32 %s98, 1
      %s100 = scalar_select %p97, %s98, %s99
      %p103 = pneg %p97
      %p104 = scmp.eq.s32.totalorder %s11, 7
      %p105 = por %p103, %p104
      %p106 = scmp.ne.s32.totalorder %s98, %s101
      %p107 = scmp.eq.s32.totalorder %s11, 0
      %p108 = por %p106, %p107
      %p109 = scmp.ne.s32.totalorder %s98, %s101
      %p110 = scmp.eq.s32.totalorder %s16, 7
      %p111 = por %p109, %p110
      %p112 = scmp.ne.s32.totalorder %s101, %s102
      %p113 = scmp.eq.s32.totalorder %s16, 0
      %p114 = por %p112, %p113
      %p115 = scmp.ne.s32.totalorder %s101, %s102
      %p116 = scmp.eq.s32.totalorder %s17, 7
      %p117 = por %p115, %p116
      %p119 = scmp.ne.s32.totalorder %s102, %s118
      %p120 = scmp.eq.s32.totalorder %s17, 0
      %p121 = por %p119, %p120
      %p122 = scmp.le.s32.totalorder 1, %s11
      %p123 = scmp.lt.s32.totalorder %s11, 9
      %p124 = pnand %p122, %p123
      %p125 = pneg %p124
      // Predicated region
      $region9: #{_lambda_.1} parent=5 // pred_check
        _
      $region10: #{_lambda_.1} parent=5 // pred_check_branch
        %127 = sbr.rel (%p124) target = $region12
      $region11: #{_lambda_.1} parent=5 // pred_region
        %s128 = ssub.s32 %s11, 1
      $region12: #{_lambda_.1} parent=5 // pred_fallthru
        _
      %p129 = scmp.lt.s32.totalorder %s11, 8
      // Predicated region
      $region13: #{_lambda_.1} parent=5 // pred_check
        %p130 = pneg %p129
      $region14: #{_lambda_.1} parent=5 // pred_check_branch
        %132 = sbr.rel (%p130) target = $region16
      $region15: #{_lambda_.1} parent=5 // pred_region
        // Predicated region
        $region17: #{_lambda_.1} parent=15 // pred_check
          %p133 = pneg %p54
        $region18: #{_lambda_.1} parent=15 // pred_check_branch
          %135 = sbr.rel (%p133) target = $region20
        $region19: #{_lambda_.1} parent=15 // pred_region
          %p136 = scmp.lt.s32.totalorder %s20, 3
          %s137 = scalar_select %p136, %s20, 3
          %p138 = scmp.lt.s32.totalorder %s18, 1
          %s139 = scalar_select %p138, %s18, 1
          %p140 = scmp.lt.s32.totalorder %s19, 0
          %s141 = scalar_select %p140, %s19, 0
          %s142 = sadd.s32 %s141, %s139
          %s143 = smul.addr %s137, 2
          %s144 = sadd.s32 %s142, %s143
          %s145 = smul.addr %s144, 8
          %s146 = scalar_lea.vmem %s0, %s145
        $region20: #{_lambda_.1} parent=15 // pred_fallthru
          _
        // Predicated region
        $region21: #{_lambda_.1} parent=15 // pred_check
          %p147 = pneg %p80
        $region22: #{_lambda_.1} parent=15 // pred_check_branch
          %149 = sbr.rel (%p147) target = $region24
        $region23: #{_lambda_.1} parent=15 // pred_region
          %p150 = scmp.lt.s32.totalorder %s18, 1
          %s151 = scalar_select %p150, %s18, 1
          %s152 = smul.addr %s151, 8
          %s153 = scalar_lea.vmem %s1, %s152
        $region24: #{_lambda_.1} parent=15 // pred_fallthru
          _
      $region16: #{_lambda_.1} parent=5 // pred_fallthru
        _
      %p154 = scmp.le.s32.totalorder 1, %s11
      %p155 = scmp.lt.s32.totalorder %s11, 9
      %p156 = pnand %p154, %p155
      %p157 = pneg %p156
      // Predicated region
      $region25: #{_lambda_.1} parent=5 // pred_check
        _
      $region26: #{_lambda_.1} parent=5 // pred_check_branch
        %159 = sbr.rel (%p156) target = $region28
      $region27: #{_lambda_.1} parent=5 // pred_region
        %s160 = ssub.s32 %s11, 1
        %p161 = scmp.lt.s32.totalorder %s23, 3
        %s162 = scalar_select %p161, %s23, 3
        %p163 = scmp.lt.s32.totalorder %s21, 1
        %s164 = scalar_select %p163, %s21, 1
        %p165 = scmp.lt.s32.totalorder %s22, 0
        %s166 = scalar_select %p165, %s22, 0
        %s167 = sadd.s32 %s166, %s164
        %s168 = smul.addr %s162, 2
        %s169 = sadd.s32 %s167, %s168
        %s170 = smul.addr %s169, 8
        %s171 = scalar_lea.vmem %s0, %s170
        %p172 = pneg %p60
        %p173 = pneg %p57
        %p174 = scmp.lt.s32.totalorder %s21, 1
        %s175 = scalar_select %p174, %s21, 1
        %s176 = smul.addr %s175, 8
        %s177 = scalar_lea.vmem %s1, %s176
        %p178 = pneg %p86
        %p179 = pneg %p83
        %p180 = pneg %p114
        %p181 = pneg %p111
        %s182 = sand.u32 %s101, 1
        %s183 = scalar_lea.sflag [#allocation4], %s182
        %s184 = sand.u32 %s101, 1
        %s185 = smul.addr %s184, 8
        %s186 = scalar_lea.vmem [#allocation3], %s185
        %p187 = scmp.lt.s32.totalorder %s23, 3
        %s188 = scalar_select %p187, %s23, 3
        %p189 = scmp.lt.s32.totalorder %s21, 1
        %s190 = scalar_select %p189, %s21, 1
        %p191 = scmp.lt.s32.totalorder %s22, 0
        %s192 = scalar_select %p191, %s22, 0
        %s193 = sadd.s32 %s192, %s190
        %s194 = smul.addr %s188, 2
        %s195 = sadd.s32 %s193, %s194
        %s196 = smul.addr %s195, 8
        %s197 = scalar_lea.vmem %s0, %s196
        %p198 = scmp.lt.s32.totalorder %s21, 1
        %s199 = scalar_select %p198, %s21, 1
        %s200 = smul.addr %s199, 8
        %s201 = scalar_lea.vmem %s1, %s200
        %p202 = scmp.eq.s32.totalorder %s23, 0
        // Predicated region
        $region29: #{_lambda_.1} parent=27 // pred_check
          %p203 = pneg %p202
        $region30: #{_lambda_.1} parent=27 // pred_check_branch
          %205 = sbr.rel (%p203) target = $region32
        $region31: #{_lambda_.1} parent=27 // pred_region
          %vm206 = vcmask 261120
          %207 = vst.msk [vmem:[#allocation2] sm:$0xff] %vm206, 0.0
        $region32: #{_lambda_.1} parent=27 // pred_fallthru
          _
        %v208 = vld [vmem:[%s197] sm:$0xff]
        %v209 = vld [vmem:[%s201] sm:$0xff]
        %vm210 = vcmask 261120
        %v212 = vsel %vm210, %v208, 0
        %v215 = vsel %vm210, %v209, 0
        %217 = vmatprep.subr.mxu0 0.0
        %218 = vmatpush1.xpose.msra.mxu0 0.0
        %219 = vmatprep.subr.mxu0 0.0
        %220 = vmatpush1.xpose.msra.mxu0 0.0
        %221 = vmatprep.subr.mxu0 0.0
        %222 = vmatpush1.xpose.msra.mxu0 0.0
        %223 = vmatprep.subr.mxu0 0.0
        %224 = vmatpush1.xpose.msra.mxu0 0.0
        %225 = vmatprep.subr.mxu0 0.0
        %226 = vmatpush1.xpose.msra.mxu0 0.0
        %227 = vmatprep.subr.mxu0 0.0
        %228 = vmatpush1.xpose.msra.mxu0 0.0
        %229 = vmatprep.subr.mxu0 0.0
        %230 = vmatpush1.xpose.msra.mxu0 0.0
        %231 = vmatprep.subr.mxu0 0.0
        %232 = vmatpush1.xpose.msra.mxu0 0.0
        %233 = vmatprep.subr.mxu0 0.0
        %234 = vmatpush1.xpose.msra.mxu0 0.0
        %235 = vmatprep.subr.mxu0 0.0
        %236 = vmatpush1.xpose.msra.mxu0 0.0
        %237 = vmatprep.subr.mxu0 0.0
        %238 = vmatpush1.xpose.msra.mxu0 0.0
        %239 = vmatprep.subr.mxu0 0.0
        %240 = vmatpush1.xpose.msra.mxu0 0.0
        %241 = vmatprep.subr.mxu0 0.0
        %242 = vmatpush1.xpose.msra.mxu0 0.0
        %243 = vmatprep.subr.mxu0 0.0
        %244 = vmatpush1.xpose.msra.mxu0 0.0
        %245 = vmatprep.subr.mxu0 0.0
        %246 = vmatpush1.xpose.msra.mxu0 0.0
        %247 = vmatprep.subr.mxu0 0.0
        %248 = vmatpush1.xpose.msra.mxu0 %v215
        %249 = vmatprep.subr.mxu0 0.0
        %250 = vmatpush2.xpose.msra.mxu0 0.0
        %251 = vmatprep.subr.mxu0 0.0
        %252 = vmatpush2.xpose.msra.mxu0 0.0
        %253 = vmatprep.subr.mxu0 0.0
        %254 = vmatpush2.xpose.msra.mxu0 0.0
        %255 = vmatprep.subr.mxu0 0.0
        %256 = vmatpush2.xpose.msra.mxu0 0.0
        %257 = vmatprep.subr.mxu0 0.0
        %258 = vmatpush2.xpose.msra.mxu0 0.0
        %259 = vmatprep.subr.mxu0 0.0
        %260 = vmatpush2.xpose.msra.mxu0 0.0
        %261 = vmatprep.subr.mxu0 0.0
        %262 = vmatpush2.xpose.msra.mxu0 0.0
        %263 = vmatprep.subr.mxu0 0.0
        %264 = vmatpush2.xpose.msra.mxu0 0.0
        %265 = vmatprep.subr.mxu0 0.0
        %266 = vmatpush2.xpose.msra.mxu0 0.0
        %267 = vmatprep.subr.mxu0 0.0
        %268 = vmatpush2.xpose.msra.mxu0 0.0
        %269 = vmatprep.subr.mxu0 0.0
        %270 = vmatpush2.xpose.msra.mxu0 0.0
        %271 = vmatprep.subr.mxu0 0.0
        %272 = vmatpush2.xpose.msra.mxu0 0.0
        %273 = vmatprep.subr.mxu0 0.0
        %274 = vmatpush2.xpose.msra.mxu0 0.0
        %275 = vmatprep.subr.mxu0 0.0
        %276 = vmatpush2.xpose.msra.mxu0 0.0
        %277 = vmatprep.subr.mxu0 0.0
        %278 = vmatpush2.xpose.msra.mxu0 0.0
        %279 = vmatprep.subr.mxu0 0.0
        %280 = vmatpush2.xpose.msra.mxu0 0.0
        %281 = vmatprep.mubr.f32.mxu0 0.0
        %282 = vmatmul.mubr.f32.gmra.mxu0 %v212
        %v283 = vpop.f32.mrf.mxu0
        %v284 = vadd.f32 0.0, %v283
        %v285 = vpop.f32.mrf.mxu0
        %286 = vdwg.mxu0
        %v287 = vmul.f32 %v284, 0.17677669
        %vm288 = vcmask 64512
        %v289 = vsel %vm288, %v287, -inf
        %290 = vmax.xlane.f32.xlu0 %v289
        %v291 = vpop.xlane.xlu0 %290
        %v292 = vsub.f32 %v287, %v291
        %v293 = vmul.f32 %v292, 1.442695
        %v294 = vpow.pop %v293
        %v295 = vsel %vm288, %v294, 0.0
        %296 = vadd.xlane.f32.xlu0 %v295
        %v297 = vpop.xlane.xlu0 %296
        %v298 = vrcp.pop %v297
        %v299 = vmul.f32 %v294, %v298
        %v301 = vsel %vm288, %v299, 0
        %303 = vmatprep.subr.mxu0 0.0
        %304 = vmatpush1.msra.mxu0 0.0
        %305 = vmatprep.subr.mxu0 0.0
        %306 = vmatpush1.msra.mxu0 0.0
        %307 = vmatprep.subr.mxu0 0.0
        %308 = vmatpush1.msra.mxu0 0.0
        %309 = vmatprep.subr.mxu0 0.0
        %310 = vmatpush1.msra.mxu0 0.0
        %311 = vmatprep.subr.mxu0 0.0
        %312 = vmatpush1.msra.mxu0 0.0
        %313 = vmatprep.subr.mxu0 0.0
        %314 = vmatpush1.msra.mxu0 0.0
        %315 = vmatprep.subr.mxu0 0.0
        %316 = vmatpush1.msra.mxu0 0.0
        %317 = vmatprep.subr.mxu0 0.0
        %318 = vmatpush1.msra.mxu0 0.0
        %319 = vmatprep.subr.mxu0 0.0
        %320 = vmatpush1.msra.mxu0 0.0
        %321 = vmatprep.subr.mxu0 0.0
        %322 = vmatpush1.msra.mxu0 0.0
        %323 = vmatprep.subr.mxu0 0.0
        %324 = vmatpush1.msra.mxu0 0.0
        %325 = vmatprep.subr.mxu0 0.0
        %326 = vmatpush1.msra.mxu0 0.0
        %327 = vmatprep.subr.mxu0 0.0
        %328 = vmatpush1.msra.mxu0 0.0
        %329 = vmatprep.subr.mxu0 0.0
        %330 = vmatpush1.msra.mxu0 0.0
        %331 = vmatprep.subr.mxu0 0.0
        %332 = vmatpush1.msra.mxu0 0.0
        %333 = vmatprep.subr.mxu0 0.0
        %334 = vmatpush1.msra.mxu0 %v209
        %335 = vmatprep.subr.mxu0 0.0
        %336 = vmatpush2.msra.mxu0 0.0
        %337 = vmatprep.subr.mxu0 0.0
        %338 = vmatpush2.msra.mxu0 0.0
        %339 = vmatprep.subr.mxu0 0.0
        %340 = vmatpush2.msra.mxu0 0.0
        %341 = vmatprep.subr.mxu0 0.0
        %342 = vmatpush2.msra.mxu0 0.0
        %343 = vmatprep.subr.mxu0 0.0
        %344 = vmatpush2.msra.mxu0 0.0
        %345 = vmatprep.subr.mxu0 0.0
        %346 = vmatpush2.msra.mxu0 0.0
        %347 = vmatprep.subr.mxu0 0.0
        %348 = vmatpush2.msra.mxu0 0.0
        %349 = vmatprep.subr.mxu0 0.0
        %350 = vmatpush2.msra.mxu0 0.0
        %351 = vmatprep.subr.mxu0 0.0
        %352 = vmatpush2.msra.mxu0 0.0
        %353 = vmatprep.subr.mxu0 0.0
        %354 = vmatpush2.msra.mxu0 0.0
        %355 = vmatprep.subr.mxu0 0.0
        %356 = vmatpush2.msra.mxu0 0.0
        %357 = vmatprep.subr.mxu0 0.0
        %358 = vmatpush2.msra.mxu0 0.0
        %359 = vmatprep.subr.mxu0 0.0
        %360 = vmatpush2.msra.mxu0 0.0
        %361 = vmatprep.subr.mxu0 0.0
        %362 = vmatpush2.msra.mxu0 0.0
        %363 = vmatprep.subr.mxu0 0.0
        %364 = vmatpush2.msra.mxu0 0.0
        %365 = vmatprep.subr.mxu0 0.0
        %366 = vmatpush2.msra.mxu0 0.0
        %367 = vmatprep.mubr.f32.mxu0 0.0
        %368 = vmatmul.mubr.f32.gmra.mxu0 %v301
        %v369 = vpop.f32.mrf.mxu0
        %v370 = vadd.f32 0.0, %v369
        %v371 = vpop.f32.mrf.mxu0
        %372 = vdwg.mxu0
        %v373 = vld [vmem:[#allocation2] sm:$0xff]
        %v374 = vadd.f32 %v373, %v370
        %375 = vst.msk [vmem:[#allocation2] sm:$0xff] %vm210, %v374
        %p376 = scmp.eq.s32.totalorder %s23, 3
        // Predicated region
        $region33: #{_lambda_.1} parent=27 // pred_check
          %p377 = pneg %p376
        $region34: #{_lambda_.1} parent=27 // pred_check_branch
          %379 = sbr.rel (%p377) target = $region36
        $region35: #{_lambda_.1} parent=27 // pred_region
          %v380 = vld [vmem:[#allocation2] sm:$0xff]
          %v381 = vmul.f32 %v380, 0.25
          %382 = vst.msk [vmem:[%s186] sm:$0xff] %vm210, %v381
        $region36: #{_lambda_.1} parent=27 // pred_fallthru
          _
        %s383 = sand.u32 %s101, 1
        %s384 = scalar_lea.sflag [#allocation4], %s383
        %s385 = sand.u32 %s101, 1
        %s386 = smul.addr %s385, 8
        %s387 = scalar_lea.vmem [#allocation3], %s386
        // Predicated region
        $region37: #{_lambda_.1} parent=27 // pred_check
          %p388 = pneg %p111
        $region38: #{_lambda_.1} parent=27 // pred_check_branch
          %390 = sbr.rel (%p388) target = $region40
        $region39: #{_lambda_.1} parent=27 // pred_region
          %s392 = ssub.s32 128, 128
          %393 = vsyncadd %s384, %s392
          %s394 = sadd.s32 %s22, %s21
          %s395 = smul.addr %s394, 128
          %s396 = scalar_lea.hbm %s2, %s395
          %s398 = sshll.u32 %s387, 4
          %s399 = int_to_ptr.vmem [resolvable:$true] %s398
          %401 = dma.vmem_to_hbm [thread:$0]  %s399, 128, %s396, %s384
        $region40: #{_lambda_.1} parent=27 // pred_fallthru
          _
      $region28: #{_lambda_.1} parent=5 // pred_fallthru
        _
      %p402 = scmp.le.s32.totalorder 2, %s11
      // Predicated region
      $region41: #{_lambda_.1} parent=5 // pred_check
        %p403 = pneg %p402
      $region42: #{_lambda_.1} parent=5 // pred_check_branch
        %405 = sbr.rel (%p403) target = $region44
      $region43: #{_lambda_.1} parent=5 // pred_region
        %s406 = ssub.s32 %s11, 2
        // Predicated region
        $region45: #{_lambda_.1} parent=43 // pred_check
          %p407 = pneg %p117
        $region46: #{_lambda_.1} parent=43 // pred_check_branch
          %409 = sbr.rel (%p407) target = $region48
        $region47: #{_lambda_.1} parent=43 // pred_region
          %s410 = sand.u32 %s102, 1
          %s411 = scalar_lea.sflag [#allocation4], %s410
          %s412 = sand.u32 %s102, 1
          %s413 = smul.addr %s412, 8
          %s414 = scalar_lea.vmem [#allocation3], %s413
          %415 = dma.done %s411, 128
        $region48: #{_lambda_.1} parent=43 // pred_fallthru
          _
      $region44: #{_lambda_.1} parent=5 // pred_fallthru
        _
    $region6: #{_lambda_.1} parent=1 // loop_footer
      %s15 = sadd.s32 1, %s11
    $region7: #{_lambda_.1} parent=1 // loop_footer_branch
      %10 = sbr.rel target = $region3
    $region8: #{_lambda_.1} parent=1 // loop_exit
      _
    %416 = vsyncpa [#allocation4], 1
    %s417 = scalar_lea.sflag [#allocation4], 1
    %418 = vsyncpa %s417, 1

</llo_original>
